<compile_context>
chip_gen: v7x
topology: tpu7x:2x2x1
jax: 0.10.0
libtpu: 0.0.40
codegen_flags: <defaults>
</compile_context>

<pallas_src>
import functools

import jax
import jax.numpy as jnp
from jax.experimental import pallas as pl
from jax.experimental.pallas import tpu as pltpu


# --------------------------- hardware-aware config ---------------------------


def _hw_config():
    """Generation-aware VMEM budget and tile targets.

    v5e/v6e have 128 MiB physical VMEM -> large tiles, 96 MiB scoped limit.
    v7x has 64 MiB per TensorCore -> trimmed tiles, 48 MiB scoped limit.
    Falls back to the conservative (v7x-sized) budget if the query fails.
    """
    try:
        vmem_bytes = int(pltpu.get_tpu_info().vmem_capacity_bytes)
    except Exception:
        vmem_bytes = 64 * 1024 * 1024
    if vmem_bytes >= 100 * 1024 * 1024:
        return dict(
            vmem_limit=96 * 1024 * 1024,
            lin_tm=512, lin_tn=512, lin_tk=1024,
            ffn_tm=512, ffn_th=512,
            ln_tm=1024,
            attn_tq=256, attn_tkv=512,
        )
    return dict(
        vmem_limit=48 * 1024 * 1024,
        lin_tm=256, lin_tn=256, lin_tk=512,
        ffn_tm=256, ffn_th=256,
        ln_tm=512,
        attn_tq=256, attn_tkv=256,
    )


_HW = _hw_config()
_VMEM_LIMIT = _HW["vmem_limit"]


def _tile_and_pad(dim, target):
    """Pick a tile aiming at `target` (targets are 8/128-aligned by choice).

    Returns (tile, padded_dim).  dims <= target use one full-dim tile (always
    a legal block shape); larger dims are padded up to a multiple of `target`
    so the grid never silently falls back to an untiled, VMEM-blowing axis.
    """
    if dim <= target:
        return dim, dim
    if dim % target == 0:
        return target, dim
    return target, (-(-dim // target)) * target


def _attn_tile(dim, target, align):
    """Largest `align`-multiple divisor of `dim` that is <= target, else full."""
    if dim <= target:
        return dim
    t = (min(target, dim) // align) * align
    while t >= align:
        if dim % t == 0:
            return t
        t -= align
    return dim


# --------------------------- tiled linear (matmul) ---------------------------


def _linear_kernel(x_ref, w_ref, b_ref, o_ref, acc_ref):
    @pl.when(pl.program_id(2) == 0)
    def _():
        acc_ref[...] = jnp.zeros_like(acc_ref)

    acc_ref[...] += jnp.dot(
        x_ref[...].astype(jnp.bfloat16),
        w_ref[...],                       # weights already stored bf16
        preferred_element_type=jnp.float32,
    )

    @pl.when(pl.program_id(2) == pl.num_programs(2) - 1)
    def _():
        o_ref[...] = (acc_ref[...] + b_ref[...]).astype(o_ref.dtype)


def linear(x, w, b, *, out_dtype=jnp.bfloat16, tm=None, tn=None, tk=None):
    """y = x @ w + b tiled over (M, N, K); edge dims are zero-padded."""
    tm = _HW["lin_tm"] if tm is None else tm
    tn = _HW["lin_tn"] if tn is None else tn
    tk = _HW["lin_tk"] if tk is None else tk
    M, K = x.shape
    Kw, N = w.shape
    assert Kw == K
    tm, Mp = _tile_and_pad(M, tm)
    tn, Np = _tile_and_pad(N, tn)
    tk, Kp = _tile_and_pad(K, tk)
    if (Mp, Kp) != (M, K):
        x = jnp.pad(x, ((0, Mp - M), (0, Kp - K)))
    if (Kp, Np) != (K, N):
        w = jnp.pad(w, ((0, Kp - K), (0, Np - N)))
    if Np != N:
        b = jnp.pad(b, (0, Np - N))
    grid = (Mp // tm, Np // tn, Kp // tk)
    out = pl.pallas_call(
        _linear_kernel,
        out_shape=jax.ShapeDtypeStruct((Mp, Np), out_dtype),
        grid_spec=pltpu.PrefetchScalarGridSpec(
            num_scalar_prefetch=0,
            grid=grid,
            in_specs=[
                pl.BlockSpec((tm, tk), lambda i, j, k: (i, k)),
                pl.BlockSpec((tk, tn), lambda i, j, k: (k, j)),
                pl.BlockSpec((1, tn), lambda i, j, k: (0, j)),
            ],
            out_specs=pl.BlockSpec((tm, tn), lambda i, j, k: (i, j)),
            scratch_shapes=[pltpu.VMEM((tm, tn), jnp.float32)],
        ),
        compiler_params=pltpu.CompilerParams(
            dimension_semantics=("parallel", "parallel", "arbitrary"),
            vmem_limit_bytes=_VMEM_LIMIT,
        ),
    )(x, w, b.reshape(1, Np))
    if (Mp, Np) != (M, N):
        out = out[:M, :N]
    return out


# ------------------------- fused feed-forward (MLP) --------------------------


def _ffn_kernel(x_ref, w1_ref, b1_ref, w2_ref, b2_ref, o_ref, acc_ref):
    # grid = (row tiles, hidden chunks); the 4C hidden activation stays in VMEM.
    @pl.when(pl.program_id(1) == 0)
    def _():
        acc_ref[...] = jnp.zeros_like(acc_ref)

    h = jnp.dot(
        x_ref[...].astype(jnp.bfloat16),
        w1_ref[...],
        preferred_element_type=jnp.float32,
    ) + b1_ref[...]
    h = jnp.maximum(h, 0.0)
    acc_ref[...] += jnp.dot(
        h.astype(jnp.bfloat16), w2_ref[...], preferred_element_type=jnp.float32
    )

    @pl.when(pl.program_id(1) == pl.num_programs(1) - 1)
    def _():
        o_ref[...] = (acc_ref[...] + b2_ref[...]).astype(o_ref.dtype)


def feed_forward(x, w1, b1, w2, b2, *, out_dtype=jnp.bfloat16, tm=None, th=None):
    tm = _HW["ffn_tm"] if tm is None else tm
    th = _HW["ffn_th"] if th is None else th
    M, C = x.shape
    HID = w1.shape[1]
    tm, Mp = _tile_and_pad(M, tm)
    th, Hp = _tile_and_pad(HID, th)
    if Mp != M:
        x = jnp.pad(x, ((0, Mp - M), (0, 0)))
    if Hp != HID:
        w1 = jnp.pad(w1, ((0, 0), (0, Hp - HID)))
        b1 = jnp.pad(b1, (0, Hp - HID))
        w2 = jnp.pad(w2, ((0, Hp - HID), (0, 0)))
    grid = (Mp // tm, Hp // th)
    out = pl.pallas_call(
        _ffn_kernel,
        out_shape=jax.ShapeDtypeStruct((Mp, C), out_dtype),
        grid_spec=pltpu.PrefetchScalarGridSpec(
            num_scalar_prefetch=0,
            grid=grid,
            in_specs=[
                # TODO(synk): x / b2 blocks are constant along the hidden-chunk
                # axis; single-buffer them (pipeline_mode=pl.Buffered(1)) for
                # extra VMEM headroom on v7x once convenient.
                pl.BlockSpec((tm, C), lambda i, j: (i, 0)),
                pl.BlockSpec((C, th), lambda i, j: (0, j)),
                pl.BlockSpec((1, th), lambda i, j: (0, j)),
                pl.BlockSpec((th, C), lambda i, j: (j, 0)),
                pl.BlockSpec((1, C), lambda i, j: (0, 0)),
            ],
            out_specs=pl.BlockSpec((tm, C), lambda i, j: (i, 0)),
            scratch_shapes=[pltpu.VMEM((tm, C), jnp.float32)],
        ),
        compiler_params=pltpu.CompilerParams(
            dimension_semantics=("parallel", "arbitrary"),
            vmem_limit_bytes=_VMEM_LIMIT,
        ),
    )(x, w1, b1.reshape(1, Hp), w2, b2.reshape(1, C))
    if Mp != M:
        out = out[:M]
    return out


# ------------------------- LayerNorm / residual + LN -------------------------


def _layernorm_kernel(x_ref, g_ref, b_ref, o_ref):
    x = x_ref[...].astype(jnp.float32)
    mean = jnp.mean(x, axis=-1, keepdims=True)
    var = jnp.mean(jnp.square(x - mean), axis=-1, keepdims=True)
    o_ref[...] = ((x - mean) * jax.lax.rsqrt(var + 1e-5) * g_ref[...]
                  + b_ref[...]).astype(o_ref.dtype)


def layernorm(x, gamma, beta, *, out_dtype=jnp.bfloat16, tm=None):
    tm = _HW["ln_tm"] if tm is None else tm
    M, C = x.shape
    tm, Mp = _tile_and_pad(M, tm)
    if Mp != M:
        x = jnp.pad(x, ((0, Mp - M), (0, 0)))
    out = pl.pallas_call(
        _layernorm_kernel,
        out_shape=jax.ShapeDtypeStruct((Mp, C), out_dtype),
        grid=(Mp // tm,),
        in_specs=[
            pl.BlockSpec((tm, C), lambda i: (i, 0)),
            pl.BlockSpec((1, C), lambda i: (0, 0)),
            pl.BlockSpec((1, C), lambda i: (0, 0)),
        ],
        out_specs=pl.BlockSpec((tm, C), lambda i: (i, 0)),
        compiler_params=pltpu.CompilerParams(
            dimension_semantics=("parallel",),
            vmem_limit_bytes=_VMEM_LIMIT,
        ),
    )(x, gamma.reshape(1, C), beta.reshape(1, C))
    if Mp != M:
        out = out[:M]
    return out


def _add_layernorm_kernel(x_ref, d_ref, g_ref, b_ref, r_ref, n_ref):
    # r = x + delta (new residual stream, kept f32); n = LayerNorm(r).
    r = x_ref[...] + d_ref[...].astype(jnp.float32)
    r_ref[...] = r
    mean = jnp.mean(r, axis=-1, keepdims=True)
    var = jnp.mean(jnp.square(r - mean), axis=-1, keepdims=True)
    n_ref[...] = ((r - mean) * jax.lax.rsqrt(var + 1e-5) * g_ref[...]
                  + b_ref[...]).astype(n_ref.dtype)


def add_layernorm(x, delta, gamma, beta, *, norm_dtype=jnp.bfloat16, tm=None):
    tm = _HW["ln_tm"] if tm is None else tm
    M, C = x.shape
    tm, Mp = _tile_and_pad(M, tm)
    if Mp != M:
        x = jnp.pad(x, ((0, Mp - M), (0, 0)))
        delta = jnp.pad(delta, ((0, Mp - M), (0, 0)))
    res, nrm = pl.pallas_call(
        _add_layernorm_kernel,
        out_shape=(
            jax.ShapeDtypeStruct((Mp, C), jnp.float32),
            jax.ShapeDtypeStruct((Mp, C), norm_dtype),
        ),
        grid=(Mp // tm,),
        in_specs=[
            pl.BlockSpec((tm, C), lambda i: (i, 0)),
            pl.BlockSpec((tm, C), lambda i: (i, 0)),
            pl.BlockSpec((1, C), lambda i: (0, 0)),
            pl.BlockSpec((1, C), lambda i: (0, 0)),
        ],
        out_specs=(
            pl.BlockSpec((tm, C), lambda i: (i, 0)),
            pl.BlockSpec((tm, C), lambda i: (i, 0)),
        ),
        compiler_params=pltpu.CompilerParams(
            dimension_semantics=("parallel",),
            vmem_limit_bytes=_VMEM_LIMIT,
        ),
    )(x, delta, gamma.reshape(1, C), beta.reshape(1, C))
    if Mp != M:
        res, nrm = res[:M], nrm[:M]
    return res, nrm


# ------------------------------ attention core -------------------------------


def _attention_kernel(q_ref, kv_ref, bias_ref, o_ref, acc_ref, m_ref, l_ref,
                      *, n_head, head_size, t_q, t_kv):
    """Flash-style attention: grid = (B, q-tiles, kv-tiles), kv innermost."""
    C = n_head * head_size
    qi = pl.program_id(1)
    ki = pl.program_id(2)

    @pl.when(ki == 0)
    def _():
        acc_ref[...] = jnp.zeros_like(acc_ref)
        m_ref[...] = jnp.full_like(m_ref, -jnp.inf)
        l_ref[...] = jnp.zeros_like(l_ref)

    q_start = qi * t_q
    kv_start = ki * t_kv

    # Causal skip: this kv tile contributes only if its first key position is
    # not strictly in the future of the last query row of the q tile.
    @pl.when(kv_start <= q_start + t_q - 1)
    def _():
        rows = jax.lax.broadcasted_iota(jnp.int32, (t_q, t_kv), 0) + q_start
        cols = jax.lax.broadcasted_iota(jnp.int32, (t_q, t_kv), 1) + kv_start
        visible = cols <= rows                         # True = may attend
        scale = float(head_size) ** -0.5
        for h in range(n_head):                        # static unroll over heads
            # ref-sliced per-head loads from the fused (tile, 3C) qkv blocks
            q = q_ref[0, :, h * head_size:(h + 1) * head_size]
            k = kv_ref[0, :, C + h * head_size:C + (h + 1) * head_size]
            v = kv_ref[0, :, 2 * C + h * head_size:2 * C + (h + 1) * head_size]
            s = jax.lax.dot_general(
                q, k, (((1,), (1,)), ((), ())),
                preferred_element_type=jnp.float32)
            # bias tile is pure RPE values (bf16); mask applied here in f32.
            s = s * scale + bias_ref[h].astype(jnp.float32)
            s = jnp.where(visible, s, jnp.float32(-1e30))
            m_prev = m_ref[:, h:h + 1]
            m_new = jnp.maximum(m_prev, jnp.max(s, axis=-1, keepdims=True))
            alpha = jnp.exp(m_prev - m_new)
            p = jnp.exp(s - m_new)
            l_ref[:, h:h + 1] = alpha * l_ref[:, h:h + 1] + jnp.sum(
                p, axis=-1, keepdims=True)
            csl = slice(h * head_size, (h + 1) * head_size)
            acc_ref[:, csl] = alpha * acc_ref[:, csl] + jnp.dot(
                p.astype(jnp.bfloat16), v, preferred_element_type=jnp.float32)
            m_ref[:, h:h + 1] = m_new

    @pl.when(ki == pl.num_programs(2) - 1)
    def _():
        # Normalize per head, then one lane-dense (t_q, C) store.
        for h in range(n_head):
            csl = slice(h * head_size, (h + 1) * head_size)
            # approx reciprocal (~1e-3 rel err) -- fine for inference.
            acc_ref[:, csl] = acc_ref[:, csl] * pl.reciprocal(
                l_ref[:, h:h + 1], approx=True)
        o_ref[0] = acc_ref[...].astype(o_ref.dtype)


def multi_head_attention(qkv, bias, n_head, *, out_dtype=jnp.bfloat16):
    # qkv: (B, T, 3C) bf16, bias: (H, T, T) bf16 (no mask) -> out (B, T, C)
    B, T, threeC = qkv.shape
    C = threeC // 3
    hs = C // n_head
    t_q = _attn_tile(T, _HW["attn_tq"], 8)
    t_kv = _attn_tile(T, _HW["attn_tkv"], 128)
    grid = (B, T // t_q, T // t_kv)
    kernel = functools.partial(_attention_kernel, n_head=n_head, head_size=hs,
                               t_q=t_q, t_kv=t_kv)
    return pl.pallas_call(
        kernel,
        out_shape=jax.ShapeDtypeStruct((B, T, C), out_dtype),
        grid_spec=pltpu.PrefetchScalarGridSpec(
            num_scalar_prefetch=0,
            grid=grid,
            in_specs=[
                # q source: resident across the kv axis (index ignores ki)
                pl.BlockSpec((1, t_q, threeC), lambda b, q, k: (b, q, 0)),
                # kv tile: streamed along the innermost (reduction) axis
                pl.BlockSpec((1, t_kv, threeC), lambda b, q, k: (b, k, 0)),
                # RPE bias: only an (H, tq, tkv) bf16 block is ever resident
                pl.BlockSpec((n_head, t_q, t_kv), lambda b, q, k: (0, q, k)),
            ],
            out_specs=pl.BlockSpec((1, t_q, C), lambda b, q, k: (b, q, 0)),
            scratch_shapes=[
                pltpu.VMEM((t_q, C), jnp.float32),        # per-head output acc
                pltpu.VMEM((t_q, n_head), jnp.float32),   # running max m
                pltpu.VMEM((t_q, n_head), jnp.float32),   # running denom l
            ],
        ),
        compiler_params=pltpu.CompilerParams(
            dimension_semantics=("parallel", "parallel", "arbitrary"),
            vmem_limit_bytes=_VMEM_LIMIT,
        ),
    )(qkv, qkv, bias)


# ------------------------------ glue / model --------------------------------


def relative_position_bias(rpe_table, T):
    """(num_buckets, H) f32 -> (H, T, T) bf16 RPE bias, NO causal mask folded
    in (the mask is applied in f32 inside the attention kernel)."""
    num_buckets, _ = rpe_table.shape
    max_rel = (num_buckets - 1) // 2
    pos = jnp.arange(T)
    rel = pos[None, :] - pos[:, None]
    idx = jnp.clip(rel + max_rel, 0, num_buckets - 1)
    bias = jnp.transpose(rpe_table[idx], (2, 0, 1))       # (H, T, T)
    # TODO(synk): generate this tile directly inside the attention kernel from
    # the tiny (num_buckets, H) table to remove the O(H*T^2) HBM round trip.
    return bias.astype(jnp.bfloat16)


def init_params(key, vocab_size, n_embd, n_head, n_layer, max_relative_distance):
    C = n_embd
    num_buckets = 2 * max_relative_distance + 1

    def normal(k, shape, std=0.02, dtype=jnp.bfloat16):
        # weights are stored bf16 in HBM (halves weight DMA); biases/LN stay f32
        return (std * jax.random.normal(k, shape, dtype=jnp.float32)).astype(dtype)

    keys = jax.random.split(key, 2 + n_layer)
    params = {
        "tok_emb": normal(keys[0], (vocab_size, C)),
        "lnf_g": jnp.ones((C,), jnp.float32),
        "lnf_b": jnp.zeros((C,), jnp.float32),
        "head_w": normal(keys[1], (C, vocab_size)),
        "head_b": jnp.zeros((vocab_size,), jnp.float32),
        "blocks": [],
    }
    for li in range(n_layer):
        bk = jax.random.split(keys[2 + li], 5)
        blk = {
            "ln1_g": jnp.ones((C,), jnp.float32),
            "ln1_b": jnp.zeros((C,), jnp.float32),
            "ln2_g": jnp.ones((C,), jnp.float32),
            "ln2_b": jnp.zeros((C,), jnp.float32),
            # Fused QKV weight: columns [0:C]=Q, [C:2C]=K, [2C:3C]=V; within
            # each section head h owns columns [h*hs,(h+1)*hs).  No bias, as in
            # nn.Linear(..., bias=False) of the reference Head module.
            "wqkv": normal(bk[0], (C, 3 * C)),
            "proj_w": normal(bk[1], (C, C)),
            "proj_b": jnp.zeros((C,), jnp.float32),
            # RPE embedding keeps PyTorch's default Embedding init (std=1.0).
            "rpe": jax.random.normal(bk[2], (num_buckets, n_head), jnp.float32),
            "ff_w1": normal(bk[3], (C, 4 * C)),
            "ff_b1": jnp.zeros((4 * C,), jnp.float32),
            "ff_w2": normal(bk[4], (4 * C, C)),
            "ff_b2": jnp.zeros((C,), jnp.float32),
        }
        params["blocks"].append(blk)
    return params


def gpt_forward(params, tokens):
    # tokens: (B, T) int32 -> logits (B, T, vocab) f32, loss None (no targets)
    B, T = tokens.shape
    tok_emb = params["tok_emb"]
    C = tok_emb.shape[1]
    blocks = params["blocks"]
    n_layer = len(blocks)

    # token embedding gather (small XLA glue); residual stream kept in f32
    x = tok_emb[tokens].astype(jnp.float32).reshape(B * T, C)

    # pre-attention LN of the first block (subsequent LNs are fused with the
    # residual add of the preceding sub-block); normalized tensor is bf16
    xn = layernorm(x, blocks[0]["ln1_g"], blocks[0]["ln1_b"])

    zeros_3c = jnp.zeros((3 * C,), jnp.float32)

    for li, blk in enumerate(blocks):
        n_head = blk["rpe"].shape[1]
        bias = relative_position_bias(blk["rpe"], T)          # (H, T, T) bf16

        # --- self-attention sub-block ---
        qkv = linear(xn, blk["wqkv"], zeros_3c)               # (B*T, 3C) bf16
        att = multi_head_attention(qkv.reshape(B, T, 3 * C), bias, n_head)
        proj = linear(att.reshape(B * T, C), blk["proj_w"], blk["proj_b"])
        # residual add fused with the next LayerNorm
        x, xn = add_layernorm(x, proj, blk["ln2_g"], blk["ln2_b"])

        # --- feed-forward sub-block ---
        ff = feed_forward(xn, blk["ff_w1"], blk["ff_b1"], blk["ff_w2"], blk["ff_b2"])
        if li + 1 < n_layer:
            ng, nb = blocks[li + 1]["ln1_g"], blocks[li + 1]["ln1_b"]
        else:
            ng, nb = params["lnf_g"], params["lnf_b"]
        # residual add fused with the following block's LN1 (or the final LN)
        x, xn = add_layernorm(x, ff, ng, nb)

    # xn now holds final_layer_norm(x); lm head streams the (padded) vocab axis
    logits = linear(xn, params["head_w"], params["head_b"], out_dtype=jnp.float32)
    vocab = params["head_w"].shape[1]
    return logits.reshape(B, T, vocab), None


if __name__ == "__main__":
    # Small config consistent with the module's constructor.
    vocab_size = 64
    n_embd = 32
    n_head = 4
    block_size = 8
    n_layer = 2
    max_relative_distance = 16

    B, T = 2, block_size

    key = jax.random.PRNGKey(0)
    pkey, tkey = jax.random.split(key)
    params = init_params(pkey, vocab_size, n_embd, n_head, n_layer,
                         max_relative_distance)
    input_tokens = jax.random.randint(tkey, (B, T), 0, vocab_size, dtype=jnp.int32)

    logits, loss = gpt_forward(params, input_tokens)
    logits = jax.block_until_ready(logits)

    assert logits.shape == (B, T, vocab_size)
    assert loss is None
    assert bool(jnp.all(jnp.isfinite(logits)))
    print("KERNEL_OK")
</pallas_src>

<mosaic_0001>
module attributes {stable_mosaic.version = 11 : i64} {
  func.func @_layernorm_kernel(%arg0: i32, %arg1: memref<16x32xf32, #tpu.memory_space<vmem>>, %arg2: memref<1x32xf32, #tpu.memory_space<vmem>>, %arg3: memref<1x32xf32, #tpu.memory_space<vmem>>, %arg4: memref<16x32xbf16, #tpu.memory_space<vmem>>) attributes {dimension_semantics = [#tpu.dimension_semantics<parallel>], iteration_bounds = array<i64: 1>, scalar_prefetch = 0 : i64, scratch_operands = 0 : i64, tpu.core_type = #tpu.core_type<tc>, window_params = [{transform_indices = @transform_0, window_bounds = array<i64: 16, 32>}, {pipeline_mode = #tpu.pipeline_mode<synchronous>, transform_indices = @transform_1, window_bounds = array<i64: 1, 32>}, {pipeline_mode = #tpu.pipeline_mode<synchronous>, transform_indices = @transform_2, window_bounds = array<i64: 1, 32>}, {transform_indices = @transform_3, window_bounds = array<i64: 16, 32>}]} {
    %c0 = arith.constant 0 : index
    %c0_0 = arith.constant 0 : index
    %0 = vector.load %arg1[%c0, %c0_0] : memref<16x32xf32, #tpu.memory_space<vmem>>, vector<16x32xf32>
    %cst = arith.constant dense<0.000000e+00> : vector<16xf32>
    %1 = vector.multi_reduction <add>, %0, %cst [1] : vector<16x32xf32> to vector<16xf32>
    %2 = vector.shape_cast %1 : vector<16xf32> to vector<16x1xf32>
    %cst_1 = arith.constant 3.200000e+01 : f32
    %3 = vector.broadcast %cst_1 : f32 to vector<16x1xf32>
    %4 = arith.divf %2, %3 : vector<16x1xf32>
    %5 = vector.broadcast %4 : vector<16x1xf32> to vector<16x32xf32>
    %6 = arith.subf %0, %5 : vector<16x32xf32>
    %7 = arith.mulf %6, %6 : vector<16x32xf32>
    %cst_2 = arith.constant dense<0.000000e+00> : vector<16xf32>
    %8 = vector.multi_reduction <add>, %7, %cst_2 [1] : vector<16x32xf32> to vector<16xf32>
    %9 = vector.shape_cast %8 : vector<16xf32> to vector<16x1xf32>
    %cst_3 = arith.constant 3.200000e+01 : f32
    %10 = vector.broadcast %cst_3 : f32 to vector<16x1xf32>
    %11 = arith.divf %9, %10 : vector<16x1xf32>
    %12 = vector.broadcast %4 : vector<16x1xf32> to vector<16x32xf32>
    %13 = arith.subf %0, %12 : vector<16x32xf32>
    %cst_4 = arith.constant 9.99999974E-6 : f32
    %14 = vector.broadcast %cst_4 : f32 to vector<16x1xf32>
    %15 = arith.addf %11, %14 : vector<16x1xf32>
    %16 = math.rsqrt %15 : vector<16x1xf32>
    %17 = vector.broadcast %16 : vector<16x1xf32> to vector<16x32xf32>
    %18 = arith.mulf %13, %17 : vector<16x32xf32>
    %c0_5 = arith.constant 0 : index
    %c0_6 = arith.constant 0 : index
    %19 = vector.load %arg2[%c0_5, %c0_6] : memref<1x32xf32, #tpu.memory_space<vmem>>, vector<1x32xf32>
    %20 = vector.broadcast %19 : vector<1x32xf32> to vector<16x32xf32>
    %21 = arith.mulf %18, %20 : vector<16x32xf32>
    %c0_7 = arith.constant 0 : index
    %c0_8 = arith.constant 0 : index
    %22 = vector.load %arg3[%c0_7, %c0_8] : memref<1x32xf32, #tpu.memory_space<vmem>>, vector<1x32xf32>
    %23 = vector.broadcast %22 : vector<1x32xf32> to vector<16x32xf32>
    %24 = arith.addf %21, %23 : vector<16x32xf32>
    %25 = arith.truncf %24 : vector<16x32xf32> to vector<16x32xbf16>
    %c0_9 = arith.constant 0 : index
    %c0_10 = arith.constant 0 : index
    %26 = vector.load %arg4[%c0_9, %c0_10] : memref<16x32xbf16, #tpu.memory_space<vmem>>, vector<16x32xbf16>
    tpu.vector_store %arg4[%c0_9, %c0_10], %25 {strides = array<i32>} : memref<16x32xbf16, #tpu.memory_space<vmem>>, vector<16x32xbf16>,
    return
  }
  func.func @transform_0(%arg0: i32) -> (i32, i32) {
    %c0_i32 = arith.constant 0 : i32
    %c0_i32_0 = arith.constant 0 : i32
    return %arg0, %c0_i32 : i32, i32
  }
  func.func @transform_1(%arg0: i32) -> (i32, i32) {
    %c0_i32 = arith.constant 0 : i32
    %c0_i32_0 = arith.constant 0 : i32
    %c0_i32_1 = arith.constant 0 : i32
    return %c0_i32, %c0_i32_0 : i32, i32
  }
  func.func @transform_2(%arg0: i32) -> (i32, i32) {
    %c0_i32 = arith.constant 0 : i32
    %c0_i32_0 = arith.constant 0 : i32
    %c0_i32_1 = arith.constant 0 : i32
    return %c0_i32, %c0_i32_0 : i32, i32
  }
  func.func @transform_3(%arg0: i32) -> (i32, i32) {
    %c0_i32 = arith.constant 0 : i32
    %c0_i32_0 = arith.constant 0 : i32
    return %arg0, %c0_i32 : i32, i32
  }
}

</mosaic_0001>

<llo_original>
// kernel: tpu_custom_call.1
$region0: #{tpu_custom_call.1}
  #allocation0 [shape = 'u32[]', space=smem, size = 0x4, offset = 0x4, fixed_abs, tag = 'smem constant byte address 0x4 - core index']
  #allocation1 [shape = 'u32[144,128]{1,0:T(1,128)}', space=vmem, size = 0x12000, scoped, tag = 'internal scratch']
  %s0 = inlined_call_operand.hbm [shape: f32[16,32], index: 0, kind: input, shape index: {}]
  %s1 = inlined_call_operand.vmem [shape: f32[1,32], index: 1, kind: input, shape index: {}]
  %s2 = inlined_call_operand.vmem [shape: f32[1,32], index: 2, kind: input, shape index: {}]
  %s3 = inlined_call_operand.hbm [shape: bf16[16,32], index: 3, kind: output, shape index: {}]
  %s4 = sld [smem:[#allocation0]]
  $region26: #{tpu_custom_call.1} parent=0
    _
  %s6 = ssub.s32 1, %s4
  %s7 = scalar_select 0, %s6, %s4
  $region1: #{tpu_custom_call.1} parent=0
    #allocation2 [shape = 'u8[8192]{0}', space=vmem, size = 0x2000, scoped, tag = 'input window, operand 0, single buffered']
    #allocation3 [shape = 's32[1]{0}', space=sflag, size = 0x4, scoped, tag = 'scoped memory for tpu_custom_call.1']
    #allocation4 [shape = 's32[1]{0}', space=sflag, size = 0x4, scoped, tag = 'scoped memory for tpu_custom_call.1']
    #allocation5 [shape = 'u8[4096]{0}', space=vmem, size = 0x1000, scoped, tag = 'output window, operand 0, single buffered']
    %8 = vsyncpa [#allocation3], 0
    %9 = vsyncpa [#allocation4], 0
    // Predicated region
    $region2: #{tpu_custom_call.1} parent=1 // pred_check
      _
    $region3: #{tpu_custom_call.1} parent=1 // pred_check_branch
      %11 = sbr.rel (0) target = $region5
    $region4: #{tpu_custom_call.1} parent=1 // pred_region
      %s13 = ssub.s32 256, 256
      %14 = vsyncadd [#allocation3], %s13
      %s15 = sshll.u32 [#allocation2], 4
      %s16 = int_to_ptr.vmem [resolvable:$true] %s15
      %21 = dma.hbm_to_vmem [thread:$0]  %s0, 256, %s16, [#allocation3], 128, 128, 8
    $region5: #{tpu_custom_call.1} parent=1 // pred_fallthru
      _
    // Predicated region
    $region6: #{tpu_custom_call.1} parent=1 // pred_check
      _
    $region7: #{tpu_custom_call.1} parent=1 // pred_check_branch
      %23 = sbr.rel (0) target = $region9
    $region8: #{tpu_custom_call.1} parent=1 // pred_region
      _
    $region9: #{tpu_custom_call.1} parent=1 // pred_fallthru
      _
    // Predicated region
    $region10: #{tpu_custom_call.1} parent=1 // pred_check
      _
    $region11: #{tpu_custom_call.1} parent=1 // pred_check_branch
      %25 = sbr.rel (0) target = $region13
    $region12: #{tpu_custom_call.1} parent=1 // pred_region
      _
    $region13: #{tpu_custom_call.1} parent=1 // pred_fallthru
      _
    // Predicated region
    $region14: #{tpu_custom_call.1} parent=1 // pred_check
      _
    $region15: #{tpu_custom_call.1} parent=1 // pred_check_branch
      %27 = sbr.rel (0) target = $region17
    $region16: #{tpu_custom_call.1} parent=1 // pred_region
      %28 = dma.done [#allocation3], 256
    $region17: #{tpu_custom_call.1} parent=1 // pred_fallthru
      _
    %v29 = vld [vmem:[#allocation2] sm:$0xff]
    %v30 = vld [vmem:[#allocation2 + $0x8] sm:$0xff]
    %vm31 = vcmask 261120
    %v32 = vsel %vm31, %v29, 0.0
    %33 = vadd.xlane.f32.xlu0 %v32
    %v34 = vpop.xlane.xlu0 %33
    %v35 = vsel %vm31, %v30, 0.0
    %36 = vadd.xlane.f32.xlu0 %v35
    %v37 = vpop.xlane.xlu0 %36
    %v38 = vrcp.pop 32.0
    %v39 = vmul.f32 %v34, %v38
    %v40 = vmul.f32 %v37, %v38
    %v41 = vsub.f32 %v29, %v39
    %v42 = vsub.f32 %v30, %v40
    %v43 = vmul.f32 %v41, %v41
    %v44 = vmul.f32 %v42, %v42
    %v45 = vsel %vm31, %v43, 0.0
    %46 = vadd.xlane.f32.xlu0 %v45
    %v47 = vpop.xlane.xlu0 %46
    %v48 = vsel %vm31, %v44, 0.0
    %49 = vadd.xlane.f32.xlu0 %v48
    %v50 = vpop.xlane.xlu0 %49
    %v51 = vmul.f32 %v47, %v38
    %v52 = vmul.f32 %v50, %v38
    %v53 = vadd.f32 %v51, 1e-05
    %v54 = vadd.f32 %v52, 1e-05
    %v55 = vrsqrt.pop %v53
    %v56 = vrsqrt.pop %v54
    %v57 = vmul.f32 %v41, %v55
    %v58 = vmul.f32 %v42, %v56
    %v59 = vld [vmem:[%s1] sm:$0x1]
    %v61 = vlaneseq
    %v62 = vshrl.u32 %v61, 7
    %v63 = vsub.s32 0, %v62
    %v64 = vrot.slane %v59, %v63
    %v66 = vmul.f32 %v57, %v64
    %v67 = vmul.f32 %v58, %v64
    %v68 = vld [vmem:[%s2] sm:$0x1]
    %v70 = vlaneseq
    %v71 = vshrl.u32 %v70, 7
    %v72 = vsub.s32 0, %v71
    %v73 = vrot.slane %v68, %v72
    %v75 = vadd.f32 %v66, %v73
    %v76 = vadd.f32 %v67, %v73
    %v77 = vpack.c.bf16 %v76, %v75
    %v79 = vunpack.c.l.b16 %v77
    %v80 = vunpack.c.h.b16 %v77
    %v81 = vpack.c.b16 %v79, %v79
    %v82 = vpack.c.b16 %v80, %v80
    %vm85 = vcmask 257024
    %86 = vst.msk [vmem:[#allocation5] sm:$0xf] %vm85, %v81
    %87 = vst.msk [vmem:[#allocation5 + $0x4] sm:$0xf] %vm85, %v82
    // Predicated region
    $region18: #{tpu_custom_call.1} parent=1 // pred_check
      _
    $region19: #{tpu_custom_call.1} parent=1 // pred_check_branch
      %89 = sbr.rel (0) target = $region21
    $region20: #{tpu_custom_call.1} parent=1 // pred_region
      %s91 = ssub.s32 128, 128
      %92 = vsyncadd [#allocation4], %s91
      %s93 = sshll.u32 [#allocation5], 4
      %s94 = int_to_ptr.vmem [resolvable:$true] %s93
      %99 = dma.vmem_to_hbm [thread:$0]  %s94, 128, %s3, [#allocation4], 64, 64, 4
    $region21: #{tpu_custom_call.1} parent=1 // pred_fallthru
      _
    // Predicated region
    $region22: #{tpu_custom_call.1} parent=1 // pred_check
      _
    $region23: #{tpu_custom_call.1} parent=1 // pred_check_branch
      %101 = sbr.rel (0) target = $region25
    $region24: #{tpu_custom_call.1} parent=1 // pred_region
      %102 = dma.done [#allocation4], 128
    $region25: #{tpu_custom_call.1} parent=1 // pred_fallthru
      _
    %103 = vsyncpa [#allocation3], 1
    %104 = vsyncpa [#allocation4], 1

</llo_original>
